<compile_context>
chip_gen: v6e
topology: v6e:2x2x1
jax: 0.10.0
libtpu: 0.0.40
codegen_flags: <defaults>
</compile_context>

<pallas_src>
import jax
import jax.numpy as jnp
from jax.experimental import pallas as pl
from jax.experimental.pallas import tpu as pltpu


_NEG = -1e9  # finite key-padding logit (avoids -inf - -inf NaNs)


# ---------------------------------------------------------------------------
# helpers
# ---------------------------------------------------------------------------
def _round_up(x, m):
    return ((x + m - 1) // m) * m


def _pick_tile(total, preferred, align):
    """Largest candidate that is a multiple of `align` and divides `total`."""
    for c in preferred:
        if c and c % align == 0 and 0 < c <= total and total % c == 0:
            return c
    return total  # `total` is always a multiple of 128 where this is used


def _vmem_capacity_bytes(default=64 << 20):
    """Best-effort VMEM capacity query (v5e/v6e: 128 MiB, v7x: 64 MiB)."""
    try:
        return int(pltpu.get_tpu_info().vmem_capacity_bytes)
    except Exception:
        return default


def _split_hi_lo(x):
    """Split f32 into bf16-exact hi part + small lo residual (for exact MXU folds)."""
    hi = x.astype(jnp.bfloat16).astype(jnp.float32)
    return hi, x - hi


# ---------------------------------------------------------------------------
# Kernel 1: edge_bias_encoding (standalone) -> (1, 1, L, L) bias
# ---------------------------------------------------------------------------
def _edge_bias_tile_kernel(brow_ref, mcol_ref, o_ref):
    # brow_ref: (tm, 2)  f32   col 0 = bias value if mask == 0, col 1 = mask == 1
    # mcol_ref: (1, tn)  int32 repeated c_mask for this tile's output columns
    # o_ref:    (tm, tn)
    tm, tn = o_ref.shape
    sel = jnp.broadcast_to(mcol_ref[...], (tm, tn)) != 0
    b0 = jnp.broadcast_to(brow_ref[:, 0:1], (tm, tn))
    b1 = jnp.broadcast_to(brow_ref[:, 1:2], (tm, tn))
    o_ref[...] = jnp.where(sel, b1, b0).astype(o_ref.dtype)


def edge_bias_encoding_forward(c_mask, degrees_vec, edge_emb, mask_emb, knn,
                               *, tm=None, tn=2048, out_dtype=jnp.float32):
    """Pallas implementation of edge_bias_encoding.forward.

    Returns (1, 1, N*knn, N*knn) == edge_emb[deg_rep] @ mask_emb[msk_rep].T.
    The kernel is pure HBM-writeback bound; pass out_dtype=jnp.bfloat16 to halve it.
    """
    # table[d, m] = edge_emb[d] . mask_emb[m]  -- only edge_dict_dim x 2 distinct
    # output values exist, so the big matmul collapses to a gather + select.
    table = jnp.dot(edge_emb.astype(jnp.float32), mask_emb.astype(jnp.float32).T)

    deg_rep = jnp.repeat(degrees_vec.astype(jnp.int32), knn)   # (L,)
    msk_rep = jnp.repeat(c_mask.astype(jnp.int32), knn)        # (L,)
    L = deg_rep.shape[0]
    Lp = _round_up(L, 128)                                     # padded, sliced at the end

    brow = jnp.pad(table[deg_rep], ((0, Lp - L), (0, 0)))      # (Lp, 2) f32
    mcol = jnp.pad(msk_rep, (0, Lp - L))[None, :]              # (1, Lp) int32

    # Big, lane-dense output tiles.  tm=1024 only on 128 MiB-VMEM chips (v5e/v6e);
    # v7x (64 MiB) keeps <=8 MiB blocks.
    big_vmem = _vmem_capacity_bytes() >= (100 << 20)
    tm_pref = (1024, 512, 256, 128, 64, 32, 16, 8) if big_vmem else \
              (512, 256, 128, 64, 32, 16, 8)
    tm = _pick_tile(Lp, ((tm,) if tm else ()) + tm_pref, 8)
    tn = _pick_tile(Lp, (tn, 2048, 1024, 512, 256, 128), 128)

    esize = jnp.dtype(out_dtype).itemsize
    out_block_bytes = tm * tn * esize
    vmem_limit = int(min(48 << 20, max(32 << 20, 4 * out_block_bytes)))

    out = pl.pallas_call(
        _edge_bias_tile_kernel,
        out_shape=jax.ShapeDtypeStruct((Lp, Lp), out_dtype),
        grid_spec=pltpu.PrefetchScalarGridSpec(
            num_scalar_prefetch=0,
            grid=(Lp // tm, Lp // tn),
            in_specs=[
                pl.BlockSpec((tm, 2), lambda i, j: (i, 0)),
                pl.BlockSpec((1, tn), lambda i, j: (0, j)),
            ],
            out_specs=pl.BlockSpec((tm, tn), lambda i, j: (i, j)),
        ),
        compiler_params=pltpu.CompilerParams(
            dimension_semantics=("parallel", "parallel"),
            vmem_limit_bytes=vmem_limit),
        cost_estimate=pl.CostEstimate(
            flops=Lp * Lp,
            transcendentals=0,
            bytes_accessed=esize * Lp * Lp + 4 * Lp * 2 + 4 * Lp),
    )(brow, mcol)

    return out[:L, :L][None, None, :, :]


# ---------------------------------------------------------------------------
# Kernel 2: fused attention core (scores + edge bias + softmax + @v)
# ---------------------------------------------------------------------------
def _fused_attn_kernel(q_ref, k_ref, vt_ref, o_ref, m_sc, l_sc, acc_sc):
    # q_ref:  (Hblk, block_q, dk+5)  q*scale with [b0_hi, b0_lo, d_hi, d_lo, 1] columns
    # k_ref:  (Hblk, block_k, dk+5)  k with [1, 1, msk, msk, padneg] columns
    # vt_ref: (Hblk, dk, block_k)    v transposed (sequence on lanes)
    # o_ref:  (Hblk, dk, block_q)    lane-dense output (sequence on lanes)
    kj = pl.program_id(2)

    @pl.when(kj == 0)
    def _init():
        m_sc[...] = jnp.full(m_sc.shape, -jnp.inf, m_sc.dtype)
        l_sc[...] = jnp.zeros(l_sc.shape, l_sc.dtype)
        acc_sc[...] = jnp.zeros(acc_sc.shape, acc_sc.dtype)

    # Transposed scores s[h, k, q]: one MXU matmul already containing the scale,
    # the edge bias and the key-padding logits (no VALU scale / bias / mask passes).
    s = jnp.einsum("hkd,hqd->hkq", k_ref[...], q_ref[...],
                   preferred_element_type=jnp.float32)          # (h, bk, bq)

    # Online softmax with all running stats lane-dense: (h, 1, block_q).
    m_prev = m_sc[...]
    m_new = jnp.maximum(m_prev, s.max(axis=1, keepdims=True))   # (h, 1, bq)
    alpha = jnp.exp(m_prev - m_new)
    p = jnp.exp(s - m_new)                                      # (h, bk, bq)
    l_sc[...] = alpha * l_sc[...] + p.sum(axis=1, keepdims=True)
    acc_sc[...] = alpha * acc_sc[...] + jnp.einsum(
        "hdk,hkq->hdq", vt_ref[...], p.astype(vt_ref.dtype),
        preferred_element_type=jnp.float32)                     # (h, dk, bq)
    m_sc[...] = m_new

    @pl.when(kj == pl.num_programs(2) - 1)
    def _finalize():
        # Guard fully-masked rows; EUP approx reciprocal + one Newton step (~exact).
        l = jnp.maximum(l_sc[...], jnp.float32(1e-30))
        inv = pl.reciprocal(l, approx=True)
        inv = inv * (2.0 - l * inv)
        o_ref[...] = (acc_sc[...] * inv).astype(o_ref.dtype)


def _fused_attention(qh, kh, vt, brow, msk, scale, *,
                     block_q=512, block_k=512, compute_dtype=jnp.float32):
    """qh/kh: (BH, S, dk); vt: (BH, dk, S); brow: (S, 2) f32; msk: (S,) int32.

    Returns (BH, dk, S) with the sequence dimension on lanes.
    """
    BH, S, dk = qh.shape
    Sp = _round_up(S, 128)
    pad = Sp - S
    # NOTE: on v5e with large S, block_q=1024 halves K/V re-reads (128 MiB VMEM allows it).
    block_q = _pick_tile(Sp, (block_q, 1024, 512, 256, 128), 128)
    block_k = _pick_tile(Sp, (block_k, 512, 256, 128), 128)
    dka = dk + 5

    # Fold scale + edge bias + key-padding mask into the score-matmul operands:
    #   s[k, q] = (q*scale).k + b0[q] + (b1-b0)[q]*msk[k] + padneg[k]
    # Bias columns are hi/lo split so the fold is exact even under bf16 operand
    # truncation inside the matmul.
    b0 = jnp.pad(brow[:, 0], (0, pad))
    d01 = jnp.pad(brow[:, 1] - brow[:, 0], (0, pad))
    b0_hi, b0_lo = _split_hi_lo(b0)
    d_hi, d_lo = _split_hi_lo(d01)
    mskf = jnp.pad(msk.astype(jnp.float32), (0, pad))
    ones = jnp.ones((Sp,), jnp.float32)
    padneg = jnp.where(jnp.arange(Sp) < S, 0.0, jnp.float32(_NEG))

    q_extra = jnp.broadcast_to(
        jnp.stack([b0_hi, b0_lo, d_hi, d_lo, ones], axis=-1)[None], (BH, Sp, 5))
    k_extra = jnp.broadcast_to(
        jnp.stack([ones, ones, mskf, mskf, padneg], axis=-1)[None], (BH, Sp, 5))

    qp = jnp.pad(qh * jnp.float32(scale), ((0, 0), (0, pad), (0, 0)))
    kp = jnp.pad(kh, ((0, 0), (0, pad), (0, 0)))
    q_aug = jnp.concatenate([qp, q_extra], axis=-1).astype(compute_dtype)  # (BH, Sp, dk+5)
    k_aug = jnp.concatenate([kp, k_extra], axis=-1).astype(compute_dtype)
    vtp = jnp.pad(vt, ((0, 0), (0, 0), (0, pad))).astype(compute_dtype)    # (BH, dk, Sp)

    nq, nk = Sp // block_q, Sp // block_k

    # Head batching: amortize the ~0.35us per-grid-step overhead; cap so the
    # (Hblk, block_k, block_q) f32 score/exp temporaries stay ~<=4 MiB (v7x-safe),
    # and keep >=2 programs on the parallel axes when S gives only one q block.
    cap = max(1, (4 << 20) // (4 * block_q * block_k))
    if nq == 1 and BH > 1:
        cap = min(cap, max(1, BH // 2))
    hblk = max(d for d in range(1, BH + 1) if BH % d == 0 and d <= cap)

    esz = jnp.dtype(compute_dtype).itemsize
    step_bytes = (2 * 2 * hblk * max(block_q, block_k) * dka * esz     # q/k blocks (x2 buf)
                  + 2 * 2 * hblk * dk * max(block_q, block_k) * esz    # vt/out blocks
                  + hblk * (16 + dk) * block_q * 4                     # m/l/acc scratch
                  + 4 * hblk * block_q * block_k * 4)                  # s/p temporaries
    vmem_limit = int(min(56 << 20, max(32 << 20, step_bytes + (8 << 20))))

    out = pl.pallas_call(
        _fused_attn_kernel,
        out_shape=jax.ShapeDtypeStruct((BH, dk, Sp), jnp.float32),
        grid_spec=pltpu.PrefetchScalarGridSpec(
            num_scalar_prefetch=0,
            grid=(BH // hblk, nq, nk),
            in_specs=[
                pl.BlockSpec((hblk, block_q, dka), lambda h, qi, kj: (h, qi, 0)),
                pl.BlockSpec((hblk, block_k, dka), lambda h, qi, kj: (h, kj, 0)),
                pl.BlockSpec((hblk, dk, block_k), lambda h, qi, kj: (h, 0, kj)),
            ],
            out_specs=pl.BlockSpec((hblk, dk, block_q), lambda h, qi, kj: (h, 0, qi)),
            scratch_shapes=[
                pltpu.VMEM((hblk, 1, block_q), jnp.float32),    # running max   (lane-dense)
                pltpu.VMEM((hblk, 1, block_q), jnp.float32),    # running denom (lane-dense)
                pltpu.VMEM((hblk, dk, block_q), jnp.float32),   # running numer (lane-dense)
            ],
        ),
        compiler_params=pltpu.CompilerParams(
            dimension_semantics=("parallel", "parallel", "arbitrary"),
            vmem_limit_bytes=vmem_limit),
        cost_estimate=pl.CostEstimate(
            flops=2 * BH * Sp * Sp * (dka + dk),
            transcendentals=BH * Sp * Sp,
            bytes_accessed=(esz * BH * Sp * dka                # q read once
                            + esz * nq * BH * Sp * (dka + dk)  # k/vt re-read per q block
                            + 4 * BH * dk * Sp)),              # output writeback
    )(q_aug, k_aug, vtp)

    return out[:, :, :S]                                        # (BH, dk, S)


# ---------------------------------------------------------------------------
# Full module forward
# ---------------------------------------------------------------------------
def edge_multihead_attention_forward(params, c_mask, degrees_vec, q, k, v,
                                     *, num_heads, knn):
    """Pallas implementation of EdgeMultiHeadAttention.forward.

    params: wq/bq, wk/bk, wv/bv, wo/bo (PyTorch nn.Linear layout: w is (out, in)),
            edge_emb (edge_dict_dim, hidden), mask_emb (2, hidden).
    q, k, v: (B, S, hidden) with S == c_mask.shape[0] * knn.
    """
    B, S, hidden = q.shape
    dk = hidden // num_heads
    scale = float(dk) ** -0.5

    def linear(x, w, b):
        return jnp.einsum("bsh,oh->bso", x, w) + b

    # TODO(synk): the dense q/k/v/output projections stay as plain XLA GEMMs; the
    # Pallas kernel covers the attention core (scores + edge bias + softmax + @v).
    qh = (linear(q, params["wq"], params["bq"])
          .reshape(B, S, num_heads, dk).transpose(0, 2, 1, 3).reshape(B * num_heads, S, dk))
    kh = (linear(k, params["wk"], params["bk"])
          .reshape(B, S, num_heads, dk).transpose(0, 2, 1, 3).reshape(B * num_heads, S, dk))
    # v laid out (BH, dk, S): keeps the kernel accumulator / output lane-dense.
    vt = (linear(v, params["wv"], params["bv"])
          .reshape(B, S, num_heads, dk).transpose(0, 2, 3, 1).reshape(B * num_heads, dk, S))

    # Edge-bias structure: bias[i, j] = table[deg_rep[i], msk_rep[j]]
    table = jnp.dot(params["edge_emb"].astype(jnp.float32),
                    params["mask_emb"].astype(jnp.float32).T)   # (edge_dict, 2)
    deg_rep = jnp.repeat(degrees_vec.astype(jnp.int32), knn)
    msk_rep = jnp.repeat(c_mask.astype(jnp.int32), knn)
    assert deg_rep.shape[0] == S, "N * knn must equal the attention sequence length"
    brow = table[deg_rep]            # (S, 2) per-row bias values for mask 0 / 1

    # NOTE: self.att_dropout is declared but never applied in the reference forward.
    o = _fused_attention(qh, kh, vt, brow, msk_rep, scale)       # (BH, dk, S)

    o = (o.reshape(B, num_heads, dk, S)
          .transpose(0, 3, 1, 2)
          .reshape(B, S, num_heads * dk))
    out = linear(o, params["wo"], params["bo"])
    assert out.shape == q.shape
    return out


# ---------------------------------------------------------------------------
# Pure-JAX reference (mirrors the PyTorch module exactly)
# ---------------------------------------------------------------------------
def _reference_forward(params, c_mask, degrees_vec, q, k, v, *, num_heads, knn):
    B, S, hidden = q.shape
    dk = hidden // num_heads
    scale = dk ** -0.5
    lin = lambda x, w, b: jnp.einsum("bsh,oh->bso", x, w) + b
    qh = lin(q, params["wq"], params["bq"]).reshape(B, S, num_heads, dk).transpose(0, 2, 1, 3)
    kh = lin(k, params["wk"], params["bk"]).reshape(B, S, num_heads, dk).transpose(0, 2, 1, 3)
    vh = lin(v, params["wv"], params["bv"]).reshape(B, S, num_heads, dk).transpose(0, 2, 1, 3)
    s = jnp.einsum("bhqd,bhkd->bhqk", qh * scale, kh)
    deg_rep = jnp.repeat(degrees_vec.astype(jnp.int32), knn)
    msk_rep = jnp.repeat(c_mask.astype(jnp.int32), knn)
    bias = (params["edge_emb"][deg_rep] @ params["mask_emb"][msk_rep].T)[None, None]
    p = jax.nn.softmax(s + bias, axis=3)
    o = jnp.einsum("bhqk,bhkd->bhqd", p, vh).transpose(0, 2, 1, 3).reshape(B, S, hidden)
    return lin(o, params["wo"], params["bo"])


if __name__ == "__main__":
    hidden_size = 64
    num_heads = 4
    edge_dict_dim = 16
    knn = 16
    N = 8                       # nodes -> L = S = N * knn = 128
    S = N * knn
    B = 2

    key = jax.random.PRNGKey(0)
    keys = jax.random.split(key, 11)
    bound = 1.0 / (hidden_size ** 0.5)
    uni = lambda kk, shape: jax.random.uniform(kk, shape, jnp.float32, -bound, bound)
    params = {
        "wq": uni(keys[0], (hidden_size, hidden_size)), "bq": uni(keys[1], (hidden_size,)),
        "wk": uni(keys[2], (hidden_size, hidden_size)), "bk": uni(keys[3], (hidden_size,)),
        "wv": uni(keys[4], (hidden_size, hidden_size)), "bv": uni(keys[5], (hidden_size,)),
        "wo": uni(keys[6], (hidden_size, hidden_size)), "bo": uni(keys[7], (hidden_size,)),
        # nn.Embedding default init ~ N(0, 1)
        "edge_emb": jax.random.normal(keys[8], (edge_dict_dim, hidden_size), jnp.float32),
        "mask_emb": jax.random.normal(keys[9], (2, hidden_size), jnp.float32),
    }
    kq, kk_, kv, kd, kc = jax.random.split(keys[10], 5)
    q = jax.random.normal(kq, (B, S, hidden_size), jnp.float32)
    k = jax.random.normal(kk_, (B, S, hidden_size), jnp.float32)
    v = jax.random.normal(kv, (B, S, hidden_size), jnp.float32)
    degrees_vec = jax.random.randint(kd, (N,), 0, edge_dict_dim, dtype=jnp.int32)
    c_mask = jax.random.randint(kc, (N,), 0, 2, dtype=jnp.int32)

    # 1) Standalone edge_bias_encoding kernel (table-gather / writeback form).
    bias = edge_bias_encoding_forward(c_mask, degrees_vec,
                                      params["edge_emb"], params["mask_emb"], knn)
    bias = jax.block_until_ready(bias)
    deg_rep = jnp.repeat(degrees_vec, knn)
    msk_rep = jnp.repeat(c_mask, knn)
    ref_bias = (params["edge_emb"][deg_rep] @ params["mask_emb"][msk_rep].T)[None, None]
    assert bias.shape == (1, 1, S, S) and bias.dtype == jnp.float32
    assert jnp.allclose(bias, ref_bias, atol=1e-4, rtol=1e-5), "edge bias mismatch"

    # 2) Full EdgeMultiHeadAttention forward (fused Pallas attention core).
    out = edge_multihead_attention_forward(
        params, c_mask, degrees_vec, q, k, v, num_heads=num_heads, knn=knn)
    out = jax.block_until_ready(out)
    ref = _reference_forward(params, c_mask, degrees_vec, q, k, v,
                             num_heads=num_heads, knn=knn)
    assert out.shape == q.shape and out.dtype == jnp.float32
    assert jnp.allclose(out, ref, atol=2e-3, rtol=2e-3), "attention output mismatch"

    print("KERNEL_OK")
</pallas_src>

<mosaic_0001>
module attributes {stable_mosaic.version = 11 : i64} {
  func.func @_edge_bias_tile_kernel(%arg0: i32, %arg1: i32, %arg2: memref<128x2xf32, #tpu.memory_space<vmem>>, %arg3: memref<1x128xi32, #tpu.memory_space<vmem>>, %arg4: memref<128x128xf32, #tpu.memory_space<vmem>>) attributes {dimension_semantics = [#tpu.dimension_semantics<parallel>, #tpu.dimension_semantics<parallel>], iteration_bounds = array<i64: 1, 1>, scalar_prefetch = 0 : i64, scratch_operands = 0 : i64, tpu.core_type = #tpu.core_type<tc>, window_params = [{transform_indices = @transform_0, window_bounds = array<i64: 128, 2>}, {transform_indices = @transform_1, window_bounds = array<i64: 1, 128>}, {transform_indices = @transform_2, window_bounds = array<i64: 128, 128>}]} {
    %c0 = arith.constant 0 : index
    %c0_0 = arith.constant 0 : index
    %0 = vector.load %arg3[%c0, %c0_0] : memref<1x128xi32, #tpu.memory_space<vmem>>, vector<1x128xi32>
    %1 = vector.shape_cast %0 : vector<1x128xi32> to vector<1x128xi32>
    %2 = vector.broadcast %1 : vector<1x128xi32> to vector<128x128xi32>
    %c0_i32 = arith.constant 0 : i32
    %3 = vector.broadcast %c0_i32 : i32 to vector<128x128xi32>
    %4 = arith.cmpi ne, %2, %3 : vector<128x128xi32>
    %c0_1 = arith.constant 0 : index
    %c0_2 = arith.constant 0 : index
    %5 = vector.load %arg2[%c0_1, %c0_2] : memref<128x2xf32, #tpu.memory_space<vmem>>, vector<128x1xf32>
    %6 = vector.shape_cast %5 : vector<128x1xf32> to vector<128x1xf32>
    %7 = vector.broadcast %6 : vector<128x1xf32> to vector<128x128xf32>
    %c0_3 = arith.constant 0 : index
    %c1 = arith.constant 1 : index
    %8 = vector.load %arg2[%c0_3, %c1] : memref<128x2xf32, #tpu.memory_space<vmem>>, vector<128x1xf32>
    %9 = vector.shape_cast %8 : vector<128x1xf32> to vector<128x1xf32>
    %10 = vector.broadcast %9 : vector<128x1xf32> to vector<128x128xf32>
    %11 = arith.select %4, %10, %7 : vector<128x128xi1>, vector<128x128xf32>
    %c0_4 = arith.constant 0 : index
    %c0_5 = arith.constant 0 : index
    %12 = vector.load %arg4[%c0_4, %c0_5] : memref<128x128xf32, #tpu.memory_space<vmem>>, vector<128x128xf32>
    tpu.vector_store %arg4[%c0_4, %c0_5], %11 {strides = array<i32>} : memref<128x128xf32, #tpu.memory_space<vmem>>, vector<128x128xf32>,
    return
  }
  func.func @transform_0(%arg0: i32, %arg1: i32) -> (i32, i32) {
    %c0_i32 = arith.constant 0 : i32
    %c0_i32_0 = arith.constant 0 : i32
    return %arg0, %c0_i32 : i32, i32
  }
  func.func @transform_1(%arg0: i32, %arg1: i32) -> (i32, i32) {
    %c0_i32 = arith.constant 0 : i32
    %c0_i32_0 = arith.constant 0 : i32
    return %c0_i32, %arg1 : i32, i32
  }
  func.func @transform_2(%arg0: i32, %arg1: i32) -> (i32, i32) {
    %c0_i32 = arith.constant 0 : i32
    return %arg0, %arg1 : i32, i32
  }
}

</mosaic_0001>

<llo_original>
// kernel: tpu_custom_call.1
$region0: #{tpu_custom_call.1}
  #allocation0 [shape = 'u32[]', space=smem, size = 0x4, offset = 0x4, fixed_abs, tag = 'smem constant byte address 0x4 - core index']
  #allocation1 [shape = 'u32[144,128]{1,0:T(1,128)}', space=vmem, size = 0x12000, scoped, tag = 'internal scratch']
  %s0 = inlined_call_operand.vmem [shape: f32[128,2], index: 0, kind: input, shape index: {}]
  %s1 = inlined_call_operand.vmem [shape: s32[1,128], index: 1, kind: input, shape index: {}]
  %s2 = inlined_call_operand.hbm [shape: f32[128,128], index: 2, kind: output, shape index: {}]
  %s3 = sld [smem:[#allocation0]]
  $region18: #{tpu_custom_call.1} parent=0
    _
  %s5 = ssub.s32 1, %s3
  %s6 = scalar_select 0, %s5, %s3
  $region1: #{tpu_custom_call.1} parent=0
    #allocation2 [shape = 'u8[65536]{0}', space=vmem, size = 0x10000, scoped, tag = 'output window, operand 0, single buffered']
    #allocation3 [shape = 's32[1]{0}', space=sflag, size = 0x4, scoped, tag = 'scoped memory for tpu_custom_call.1']
    %7 = vsyncpa [#allocation3], 0
    // Predicated region
    $region2: #{tpu_custom_call.1} parent=1 // pred_check
      _
    $region3: #{tpu_custom_call.1} parent=1 // pred_check_branch
      %9 = sbr.rel (0) target = $region5
    $region4: #{tpu_custom_call.1} parent=1 // pred_region
      _
    $region5: #{tpu_custom_call.1} parent=1 // pred_fallthru
      _
    // Predicated region
    $region6: #{tpu_custom_call.1} parent=1 // pred_check
      _
    $region7: #{tpu_custom_call.1} parent=1 // pred_check_branch
      %11 = sbr.rel (0) target = $region9
    $region8: #{tpu_custom_call.1} parent=1 // pred_region
      _
    $region9: #{tpu_custom_call.1} parent=1 // pred_fallthru
      _
    %v12 = vld [vmem:[%s1] sm:$0x1]
    %v13 = vlaneseq
    %v14 = vshrl.u32 %v13, 7
    %v15 = vsub.s32 0, %v14
    %v16 = vrot.slane %v12, %v15
    %vm17 = vcmp.ne.s32.totalorder %v16, 0
    %v18 = vld [vmem:[%s0] sm:$0xff]
    %v19 = vld [vmem:[%s0 + $0x8] sm:$0xff]
    %v20 = vld [vmem:[%s0 + $0x10] sm:$0xff]
    %v21 = vld [vmem:[%s0 + $0x18] sm:$0xff]
    %v22 = vld [vmem:[%s0 + $0x20] sm:$0xff]
    %v23 = vld [vmem:[%s0 + $0x28] sm:$0xff]
    %v24 = vld [vmem:[%s0 + $0x30] sm:$0xff]
    %v25 = vld [vmem:[%s0 + $0x38] sm:$0xff]
    %v26 = vld [vmem:[%s0 + $0x40] sm:$0xff]
    %v27 = vld [vmem:[%s0 + $0x48] sm:$0xff]
    %v28 = vld [vmem:[%s0 + $0x50] sm:$0xff]
    %v29 = vld [vmem:[%s0 + $0x58] sm:$0xff]
    %v30 = vld [vmem:[%s0 + $0x60] sm:$0xff]
    %v31 = vld [vmem:[%s0 + $0x68] sm:$0xff]
    %v32 = vld [vmem:[%s0 + $0x70] sm:$0xff]
    %v33 = vld [vmem:[%s0 + $0x78] sm:$0xff]
    %35 = vset.pattern.permute.xlu0 0
    %36 = vperm.xlu0 %35, %v18
    %v37 = vpop.permute.xlu0 %36
    %40 = vset.pattern.permute.xlu0 0
    %41 = vperm.xlu0 %40, %v19
    %v42 = vpop.permute.xlu0 %41
    %45 = vset.pattern.permute.xlu0 0
    %46 = vperm.xlu0 %45, %v20
    %v47 = vpop.permute.xlu0 %46
    %50 = vset.pattern.permute.xlu0 0
    %51 = vperm.xlu0 %50, %v21
    %v52 = vpop.permute.xlu0 %51
    %55 = vset.pattern.permute.xlu0 0
    %56 = vperm.xlu0 %55, %v22
    %v57 = vpop.permute.xlu0 %56
    %60 = vset.pattern.permute.xlu0 0
    %61 = vperm.xlu0 %60, %v23
    %v62 = vpop.permute.xlu0 %61
    %65 = vset.pattern.permute.xlu0 0
    %66 = vperm.xlu0 %65, %v24
    %v67 = vpop.permute.xlu0 %66
    %70 = vset.pattern.permute.xlu0 0
    %71 = vperm.xlu0 %70, %v25
    %v72 = vpop.permute.xlu0 %71
    %75 = vset.pattern.permute.xlu0 0
    %76 = vperm.xlu0 %75, %v26
    %v77 = vpop.permute.xlu0 %76
    %80 = vset.pattern.permute.xlu0 0
    %81 = vperm.xlu0 %80, %v27
    %v82 = vpop.permute.xlu0 %81
    %85 = vset.pattern.permute.xlu0 0
    %86 = vperm.xlu0 %85, %v28
    %v87 = vpop.permute.xlu0 %86
    %90 = vset.pattern.permute.xlu0 0
    %91 = vperm.xlu0 %90, %v29
    %v92 = vpop.permute.xlu0 %91
    %95 = vset.pattern.permute.xlu0 0
    %96 = vperm.xlu0 %95, %v30
    %v97 = vpop.permute.xlu0 %96
    %100 = vset.pattern.permute.xlu0 0
    %101 = vperm.xlu0 %100, %v31
    %v102 = vpop.permute.xlu0 %101
    %105 = vset.pattern.permute.xlu0 0
    %106 = vperm.xlu0 %105, %v32
    %v107 = vpop.permute.xlu0 %106
    %110 = vset.pattern.permute.xlu0 0
    %111 = vperm.xlu0 %110, %v33
    %v112 = vpop.permute.xlu0 %111
    %114 = vset.pattern.permute.xlu0 1
    %115 = vperm.xlu0 %114, %v18
    %v116 = vpop.permute.xlu0 %115
    %118 = vset.pattern.permute.xlu0 1
    %119 = vperm.xlu0 %118, %v19
    %v120 = vpop.permute.xlu0 %119
    %122 = vset.pattern.permute.xlu0 1
    %123 = vperm.xlu0 %122, %v20
    %v124 = vpop.permute.xlu0 %123
    %126 = vset.pattern.permute.xlu0 1
    %127 = vperm.xlu0 %126, %v21
    %v128 = vpop.permute.xlu0 %127
    %130 = vset.pattern.permute.xlu0 1
    %131 = vperm.xlu0 %130, %v22
    %v132 = vpop.permute.xlu0 %131
    %134 = vset.pattern.permute.xlu0 1
    %135 = vperm.xlu0 %134, %v23
    %v136 = vpop.permute.xlu0 %135
    %138 = vset.pattern.permute.xlu0 1
    %139 = vperm.xlu0 %138, %v24
    %v140 = vpop.permute.xlu0 %139
    %142 = vset.pattern.permute.xlu0 1
    %143 = vperm.xlu0 %142, %v25
    %v144 = vpop.permute.xlu0 %143
    %146 = vset.pattern.permute.xlu0 1
    %147 = vperm.xlu0 %146, %v26
    %v148 = vpop.permute.xlu0 %147
    %150 = vset.pattern.permute.xlu0 1
    %151 = vperm.xlu0 %150, %v27
    %v152 = vpop.permute.xlu0 %151
    %154 = vset.pattern.permute.xlu0 1
    %155 = vperm.xlu0 %154, %v28
    %v156 = vpop.permute.xlu0 %155
    %158 = vset.pattern.permute.xlu0 1
    %159 = vperm.xlu0 %158, %v29
    %v160 = vpop.permute.xlu0 %159
    %162 = vset.pattern.permute.xlu0 1
    %163 = vperm.xlu0 %162, %v30
    %v164 = vpop.permute.xlu0 %163
    %166 = vset.pattern.permute.xlu0 1
    %167 = vperm.xlu0 %166, %v31
    %v168 = vpop.permute.xlu0 %167
    %170 = vset.pattern.permute.xlu0 1
    %171 = vperm.xlu0 %170, %v32
    %v172 = vpop.permute.xlu0 %171
    %174 = vset.pattern.permute.xlu0 1
    %175 = vperm.xlu0 %174, %v33
    %v176 = vpop.permute.xlu0 %175
    %v178 = vsel %vm17, %v116, %v37
    %v179 = vsel %vm17, %v120, %v42
    %v180 = vsel %vm17, %v124, %v47
    %v181 = vsel %vm17, %v128, %v52
    %v182 = vsel %vm17, %v132, %v57
    %v183 = vsel %vm17, %v136, %v62
    %v184 = vsel %vm17, %v140, %v67
    %v185 = vsel %vm17, %v144, %v72
    %v186 = vsel %vm17, %v148, %v77
    %v187 = vsel %vm17, %v152, %v82
    %v188 = vsel %vm17, %v156, %v87
    %v189 = vsel %vm17, %v160, %v92
    %v190 = vsel %vm17, %v164, %v97
    %v191 = vsel %vm17, %v168, %v102
    %v192 = vsel %vm17, %v172, %v107
    %v193 = vsel %vm17, %v176, %v112
    %194 = vst [vmem:[#allocation2] sm:$0xff] %v178
    %195 = vst [vmem:[#allocation2 + $0x8] sm:$0xff] %v179
    %196 = vst [vmem:[#allocation2 + $0x10] sm:$0xff] %v180
    %197 = vst [vmem:[#allocation2 + $0x18] sm:$0xff] %v181
    %198 = vst [vmem:[#allocation2 + $0x20] sm:$0xff] %v182
    %199 = vst [vmem:[#allocation2 + $0x28] sm:$0xff] %v183
    %200 = vst [vmem:[#allocation2 + $0x30] sm:$0xff] %v184
    %201 = vst [vmem:[#allocation2 + $0x38] sm:$0xff] %v185
    %202 = vst [vmem:[#allocation2 + $0x40] sm:$0xff] %v186
    %203 = vst [vmem:[#allocation2 + $0x48] sm:$0xff] %v187
    %204 = vst [vmem:[#allocation2 + $0x50] sm:$0xff] %v188
    %205 = vst [vmem:[#allocation2 + $0x58] sm:$0xff] %v189
    %206 = vst [vmem:[#allocation2 + $0x60] sm:$0xff] %v190
    %207 = vst [vmem:[#allocation2 + $0x68] sm:$0xff] %v191
    %208 = vst [vmem:[#allocation2 + $0x70] sm:$0xff] %v192
    %209 = vst [vmem:[#allocation2 + $0x78] sm:$0xff] %v193
    // Predicated region
    $region10: #{tpu_custom_call.1} parent=1 // pred_check
      _
    $region11: #{tpu_custom_call.1} parent=1 // pred_check_branch
      %211 = sbr.rel (0) target = $region13
    $region12: #{tpu_custom_call.1} parent=1 // pred_region
      %s213 = ssub.s32 2048, 2048
      %214 = vsyncadd [#allocation3], %s213
      %s215 = sshll.u32 [#allocation2], 4
      %s216 = int_to_ptr.vmem [resolvable:$true] %s215
      %221 = dma.vmem_to_hbm [thread:$0]  %s216, 2048, %s2, [#allocation3], 128, 128, 8
    $region13: #{tpu_custom_call.1} parent=1 // pred_fallthru
      _
    // Predicated region
    $region14: #{tpu_custom_call.1} parent=1 // pred_check
      _
    $region15: #{tpu_custom_call.1} parent=1 // pred_check_branch
      %223 = sbr.rel (0) target = $region17
    $region16: #{tpu_custom_call.1} parent=1 // pred_region
      %224 = dma.done [#allocation3], 2048
    $region17: #{tpu_custom_call.1} parent=1 // pred_fallthru
      _
    %225 = vsyncpa [#allocation3], 1

</llo_original>
